<compile_context>
chip_gen: v7x
topology: tpu7x:2x2x1
jax: 0.10.0
libtpu: 0.0.40
codegen_flags: <defaults>
</compile_context>

<pallas_src>
import functools

import numpy as np

import jax
import jax.numpy as jnp
from jax.experimental import pallas as pl
from jax.experimental.pallas import tpu as pltpu


# ----------------------------------------------------------------------------
# Host-side output-size rule (TransVOD / DETR "get_size_with_aspect_ratio")
# ----------------------------------------------------------------------------
def _get_size_with_aspect_ratio(image_size, size, max_size=None):
    # image_size is (w, h), mirroring PIL's Image.size ordering.
    w, h = image_size
    if max_size is not None:
        min_original = float(min(w, h))
        max_original = float(max(w, h))
        if max_original / min_original * size > max_size:
            size = int(round(max_size * min_original / max_original))
    if (w <= h and w == size) or (h <= w and h == size):
        return h, w
    if w < h:
        ow = size
        oh = int(size * h / w)
    else:
        oh = size
        ow = int(size * w / h)
    return oh, ow


def _round_up(x, m):
    return ((x + m - 1) // m) * m


def _pick_tile_width(dst_w_pad, max_tw=512):
    """Lane-aligned output tile width (multiple of 128, <= max_tw)."""
    if dst_w_pad <= max_tw:
        return dst_w_pad
    for tw in (512, 384, 256):
        if dst_w_pad % tw == 0:
            return tw
    return 256   # non-dividing fallback: only the final block overhangs


def _interp_matrix(dst, src):
    """Triangle-weight (non-antialiased) bilinear matrix, shape (dst, src)."""
    coord = np.clip(
        (np.arange(dst, dtype=np.float64) + 0.5) * (src / dst) - 0.5,
        0.0, src - 1.0)
    taps = np.arange(src, dtype=np.float64)[None, :]
    return np.maximum(1.0 - np.abs(coord[:, None] - taps), 0.0).astype(np.float32)


# ----------------------------------------------------------------------------
# Pallas kernels: separable bilinear resize, output-width-tiled
# ----------------------------------------------------------------------------
def _resize_rows_first_kernel(img_ref, rh_ref, rwt_ref, out_ref, tmp_ref, *,
                              out_is_int):
    # img_ref: (1, src_h, src_w)  -- re-fetched only when the channel changes
    # rh_ref : (dst_h, src_h) bf16, VMEM-resident across the whole grid
    # rwt_ref: (src_w, TW) bf16 slice of R_w^T
    # out_ref: (1, dst_h, TW)
    # tmp_ref: (dst_h, src_w) bf16 scratch, persists across W-tiles
    @pl.when(pl.program_id(1) == 0)
    def _():
        tmp_ref[...] = jnp.dot(
            rh_ref[...], img_ref[0].astype(jnp.bfloat16),
            preferred_element_type=jnp.float32).astype(jnp.bfloat16)

    out = jnp.dot(tmp_ref[...], rwt_ref[...],
                  preferred_element_type=jnp.float32)
    if out_is_int:
        out = jnp.round(out)
    out_ref[0] = out.astype(out_ref.dtype)


def _resize_cols_first_kernel(img_ref, rh_ref, rwt_ref, out_ref, *, out_is_int):
    # Column pass first (cheaper for some aspect ratios); no scratch needed.
    tmp = jnp.dot(img_ref[0].astype(jnp.bfloat16), rwt_ref[...],
                  preferred_element_type=jnp.float32)            # (src_h, TW)
    out = jnp.dot(rh_ref[...], tmp.astype(jnp.bfloat16),
                  preferred_element_type=jnp.float32)            # (dst_h, TW)
    if out_is_int:
        out = jnp.round(out)
    out_ref[0] = out.astype(out_ref.dtype)


@functools.lru_cache(maxsize=None)
def _build_resize_callable(c, src_h, src_w, dst_h, dst_w, dtype_name):
    """One compiled program per (shape -> shape, dtype); cached forever."""
    dtype = jnp.dtype(dtype_name)
    out_is_int = bool(jnp.issubdtype(dtype, jnp.integer))

    dst_w_pad = _round_up(dst_w, 128)
    tw = _pick_tile_width(dst_w_pad)
    num_w_tiles = -(-dst_w_pad // tw)

    # Interpolation matrices: built once on the host, pre-cast to bf16.
    r_h = jnp.asarray(_interp_matrix(dst_h, src_h), jnp.bfloat16)   # (dst_h, src_h)
    r_wt_np = np.zeros((src_w, dst_w_pad), np.float32)
    r_wt_np[:, :dst_w] = _interp_matrix(dst_w, src_w).T
    r_wt = jnp.asarray(r_wt_np, jnp.bfloat16)                       # (src_w, dst_w_pad)

    # Static association-order choice (MXU MAC counts).
    flops_rows_first = dst_h * src_h * src_w + dst_h * src_w * dst_w_pad
    flops_cols_first = src_h * src_w * dst_w_pad + dst_h * src_h * dst_w_pad
    rows_first = flops_rows_first <= flops_cols_first

    if rows_first:
        kernel = functools.partial(_resize_rows_first_kernel,
                                   out_is_int=out_is_int)
        scratch_shapes = [pltpu.VMEM((dst_h, src_w), jnp.bfloat16)]
        scratch_bytes = dst_h * src_w * 2
    else:
        kernel = functools.partial(_resize_cols_first_kernel,
                                   out_is_int=out_is_int)
        scratch_shapes = []
        scratch_bytes = 0

    # VMEM budget: input/output blocks are double-buffered by the pipeline.
    itemsize = dtype.itemsize
    block_bytes = (src_h * src_w * itemsize        # img block
                   + dst_h * src_h * 2             # R_h (bf16)
                   + src_w * tw * 2                # R_w^T tile (bf16)
                   + dst_h * tw * itemsize)        # out block
    vmem_limit = int(min(max(2 * block_bytes + scratch_bytes + (2 << 20),
                             16 << 20),
                         110 << 20))

    resize = pl.pallas_call(
        kernel,
        out_shape=jax.ShapeDtypeStruct((c, dst_h, dst_w_pad), dtype),
        grid=(c, num_w_tiles),
        in_specs=[
            pl.BlockSpec((1, src_h, src_w), lambda i, j: (i, 0, 0)),
            pl.BlockSpec((dst_h, src_h), lambda i, j: (0, 0)),
            pl.BlockSpec((src_w, tw), lambda i, j: (0, j)),
        ],
        out_specs=pl.BlockSpec((1, dst_h, tw), lambda i, j: (i, 0, j)),
        scratch_shapes=scratch_shapes,
        compiler_params=pltpu.CompilerParams(
            dimension_semantics=("parallel", "arbitrary"),
            vmem_limit_bytes=vmem_limit),
    )

    def run(image):
        out_padded = resize(image, r_h, r_wt)
        return out_padded[:, :, :dst_w]

    return jax.jit(run)


# ----------------------------------------------------------------------------
# Forward-pass wrapper reproducing T_Resize_as_TransVOD.forward
# ----------------------------------------------------------------------------
def t_resize_as_transvod(image, target=None, *, min_size, max_size):
    if image.ndim == 2:
        image = image[None]
    c, h, w = image.shape

    size = min_size
    if isinstance(size, (list, tuple)):
        # TODO(synk): the reference picks random.choice(min_size) on the host;
        # we take the first entry to keep this script fully deterministic.
        size = size[0]

    new_h, new_w = _get_size_with_aspect_ratio((w, h), int(size), max_size)

    resize_fn = _build_resize_callable(c, h, w, new_h, new_w, image.dtype.name)
    resized = resize_fn(image)

    if target is not None:
        target = dict(target)  # boxes / labels pass through untouched.
        target["resize_factor"] = 1
        # PIL's Image.size is (width, height); the reference unpacks it as
        # `height, width = image.size`, so the zero mask is built with swapped
        # dims ((W, H)).  Replicated faithfully; trivial jnp.zeros needs no
        # Pallas kernel.
        target["mask"] = jnp.zeros((new_w, new_h), dtype=jnp.bool_)

    return resized, target


class TResizeAsTransVOD:
    """JAX/Pallas port of T_Resize_as_TransVOD (forward pass only)."""

    def __init__(self, min_size, max_size):
        self.min_size = min_size
        self.max_size = max_size

    def __call__(self, image, target=None):
        return t_resize_as_transvod(
            image, target, min_size=self.min_size, max_size=self.max_size)


# ----------------------------------------------------------------------------
# Pure-jnp f32 reference (same separable triangle-weight math) for sanity check
# ----------------------------------------------------------------------------
def _reference_resize(image, dst_h, dst_w):
    c, src_h, src_w = image.shape
    ih = jnp.arange(dst_h, dtype=jnp.float32)
    jh = jnp.arange(src_h, dtype=jnp.float32)
    sy = jnp.clip((ih + 0.5) * (src_h / dst_h) - 0.5, 0.0, src_h - 1.0)
    r_h = jnp.maximum(1.0 - jnp.abs(sy[:, None] - jh[None, :]), 0.0)
    iw = jnp.arange(dst_w, dtype=jnp.float32)
    jw = jnp.arange(src_w, dtype=jnp.float32)
    sx = jnp.clip((iw + 0.5) * (src_w / dst_w) - 0.5, 0.0, src_w - 1.0)
    r_w = jnp.maximum(1.0 - jnp.abs(sx[:, None] - jw[None, :]), 0.0)
    tmp = jnp.einsum("hH,cHW->chW", r_h, image.astype(jnp.float32))
    return jnp.einsum("chW,wW->chw", tmp, r_w).astype(image.dtype)


if __name__ == "__main__":
    key = jax.random.PRNGKey(0)
    k_img, k_box, k_lab = jax.random.split(key, 3)

    # Small deterministic inputs: CHW image (3, 16, 20), 4 boxes, 4 labels.
    C, H, W = 3, 16, 20
    image = jax.random.uniform(k_img, (C, H, W), dtype=jnp.float32)
    boxes = jax.random.uniform(k_box, (4, 4), minval=0.0, maxval=15.0)
    labels = jax.random.randint(k_lab, (4,), 0, 10, dtype=jnp.int32)
    target = {"boxes": boxes, "labels": labels}

    module = TResizeAsTransVOD(min_size=24, max_size=40)
    out_image, out_target = module(image, target)

    jax.block_until_ready(out_image)
    jax.block_until_ready(out_target["mask"])

    new_h, new_w = out_image.shape[1], out_image.shape[2]
    assert (new_h, new_w) == (24, 30), (new_h, new_w)

    # Sanity-check the Pallas kernel against the pure-jnp f32 reference.
    # (Kernel uses bf16 operands with f32 accumulation, so use a bf16-level
    #  tolerance.)
    ref = _reference_resize(image, new_h, new_w)
    max_err = float(jnp.max(jnp.abs(out_image.astype(jnp.float32)
                                    - ref.astype(jnp.float32))))
    assert max_err < 2e-2, f"max abs error vs reference: {max_err}"
    assert out_target["resize_factor"] == 1
    assert out_target["mask"].shape == (new_w, new_h)
    assert out_target["mask"].dtype == jnp.bool_

    print("KERNEL_OK")
</pallas_src>

<mosaic_0001>
module attributes {stable_mosaic.version = 11 : i64} {
  func.func @_resize_rows_first_kernel(%arg0: i32, %arg1: i32, %arg2: memref<1x16x20xf32, #tpu.memory_space<vmem>>, %arg3: memref<24x16xbf16, #tpu.memory_space<vmem>>, %arg4: memref<20x128xbf16, #tpu.memory_space<vmem>>, %arg5: memref<1x24x128xf32, #tpu.memory_space<vmem>>, %arg6: memref<24x20xbf16, #tpu.memory_space<vmem>>) attributes {dimension_semantics = [#tpu.dimension_semantics<parallel>, #tpu.dimension_semantics<arbitrary>], iteration_bounds = array<i64: 3, 1>, scalar_prefetch = 0 : i64, scratch_operands = 1 : i64, tpu.core_type = #tpu.core_type<tc>, window_params = [{transform_indices = @transform_0, window_bounds = array<i64: 1, 16, 20>}, {pipeline_mode = #tpu.pipeline_mode<synchronous>, transform_indices = @transform_1, window_bounds = array<i64: 24, 16>}, {transform_indices = @transform_2, window_bounds = array<i64: 20, 128>}, {transform_indices = @transform_3, window_bounds = array<i64: 1, 24, 128>}]} {
    %c0_i32 = arith.constant 0 : i32
    %0 = arith.cmpi eq, %arg1, %c0_i32 : i32
    %1 = arith.extui %0 : i1 to i32
    %c0_i32_0 = arith.constant 0 : i32
    %2 = arith.cmpi ne, %1, %c0_i32_0 : i32
    scf.if %2 {
      %c0_7 = arith.constant 0 : index
      %c0_8 = arith.constant 0 : index
      %9 = vector.load %arg3[%c0_7, %c0_8] : memref<24x16xbf16, #tpu.memory_space<vmem>>, vector<24x16xbf16>
      %c0_9 = arith.constant 0 : index
      %c0_10 = arith.constant 0 : index
      %c0_11 = arith.constant 0 : index
      %10 = vector.load %arg2[%c0_9, %c0_10, %c0_11] : memref<1x16x20xf32, #tpu.memory_space<vmem>>, vector<1x16x20xf32>
      %11 = vector.shape_cast %10 : vector<1x16x20xf32> to vector<16x20xf32>
      %12 = arith.truncf %11 : vector<16x20xf32> to vector<16x20xbf16>
      %cst_12 = arith.constant dense<0.000000e+00> : vector<24x20xf32>
      %13 = tpu.matmul %9, %12, %cst_12 {dimension_numbers = #tpu.dot_dimension_numbers<[1], [0], [0], [1], [0, 0, 1, 1], [], []>} : vector<24x16xbf16>, vector<16x20xbf16>, vector<24x20xf32> -> vector<24x20xf32>
      %14 = arith.truncf %13 : vector<24x20xf32> to vector<24x20xbf16>
      %c0_13 = arith.constant 0 : index
      %c0_14 = arith.constant 0 : index
      %15 = vector.load %arg6[%c0_13, %c0_14] : memref<24x20xbf16, #tpu.memory_space<vmem>>, vector<24x20xbf16>
      tpu.vector_store %arg6[%c0_13, %c0_14], %14 {strides = array<i32>} : memref<24x20xbf16, #tpu.memory_space<vmem>>, vector<24x20xbf16>,
    } else {
    }
    %c0 = arith.constant 0 : index
    %c0_1 = arith.constant 0 : index
    %3 = vector.load %arg6[%c0, %c0_1] : memref<24x20xbf16, #tpu.memory_space<vmem>>, vector<24x20xbf16>
    %c0_2 = arith.constant 0 : index
    %c0_3 = arith.constant 0 : index
    %4 = vector.load %arg4[%c0_2, %c0_3] : memref<20x128xbf16, #tpu.memory_space<vmem>>, vector<20x128xbf16>
    %cst = arith.constant dense<0.000000e+00> : vector<24x128xf32>
    %5 = tpu.matmul %3, %4, %cst {dimension_numbers = #tpu.dot_dimension_numbers<[1], [0], [0], [1], [0, 0, 1, 1], [], []>} : vector<24x20xbf16>, vector<20x128xbf16>, vector<24x128xf32> -> vector<24x128xf32>
    %c0_4 = arith.constant 0 : index
    %c0_5 = arith.constant 0 : index
    %c0_6 = arith.constant 0 : index
    %6 = vector.load %arg5[%c0_4, %c0_5, %c0_6] : memref<1x24x128xf32, #tpu.memory_space<vmem>>, vector<1x24x128xf32>
    %7 = vector.shape_cast %6 : vector<1x24x128xf32> to vector<24x128xf32>
    %8 = vector.shape_cast %5 : vector<24x128xf32> to vector<1x24x128xf32>
    tpu.vector_store %arg5[%c0_4, %c0_5, %c0_6], %8 {strides = array<i32>} : memref<1x24x128xf32, #tpu.memory_space<vmem>>, vector<1x24x128xf32>,
    return
  }
  func.func @transform_0(%arg0: i32, %arg1: i32) -> (i32, i32, i32) {
    %c0_i32 = arith.constant 0 : i32
    %c0_i32_0 = arith.constant 0 : i32
    %c0_i32_1 = arith.constant 0 : i32
    return %arg0, %c0_i32, %c0_i32_0 : i32, i32, i32
  }
  func.func @transform_1(%arg0: i32, %arg1: i32) -> (i32, i32) {
    %c0_i32 = arith.constant 0 : i32
    %c0_i32_0 = arith.constant 0 : i32
    %c0_i32_1 = arith.constant 0 : i32
    return %c0_i32, %c0_i32_0 : i32, i32
  }
  func.func @transform_2(%arg0: i32, %arg1: i32) -> (i32, i32) {
    %c0_i32 = arith.constant 0 : i32
    %c0_i32_0 = arith.constant 0 : i32
    return %c0_i32, %arg1 : i32, i32
  }
  func.func @transform_3(%arg0: i32, %arg1: i32) -> (i32, i32, i32) {
    %c0_i32 = arith.constant 0 : i32
    %c0_i32_0 = arith.constant 0 : i32
    return %arg0, %c0_i32, %arg1 : i32, i32, i32
  }
}

</mosaic_0001>

<llo_original>
// kernel: run.1
$region0: #{run.1}
  #allocation0 [shape = 'u32[]', space=smem, size = 0x4, offset = 0x4, fixed_abs, tag = 'smem constant byte address 0x4 - core index']
  #allocation1 [shape = 'u32[144,128]{1,0:T(1,128)}', space=vmem, size = 0x12000, scoped, tag = 'internal scratch']
  #allocation2 [shape = 'bf16[24,20]{1,0:T(8,128)(2,1)}', space=vmem, size = 0x1800, scoped, tag = 'scratch operand']
  %s0 = inlined_call_operand.hbm [shape: f32[3,16,20], index: 0, kind: input, shape index: {}]
  %s1 = inlined_call_operand.hbm [shape: bf16[24,16], index: 1, kind: input, shape index: {}]
  %s2 = inlined_call_operand.hbm [shape: bf16[20,128], index: 2, kind: input, shape index: {}]
  %s3 = inlined_call_operand.hbm [shape: f32[3,24,128], index: 3, kind: output, shape index: {}]
  %s4 = sld [smem:[#allocation0]]
  $region61: #{run.1} parent=0
    _
  %s6 = ssub.s32 1, %s4
  %s7 = scalar_select 0, %s6, %s4
  $region1: #{run.1} parent=0
    #allocation3 [shape = 'u8[16384]{0}', space=vmem, size = 0x4000, scoped, tag = 'input window, operand 0']
    #allocation4 [shape = 's32[2]{0}', space=sflag, size = 0x8, scoped, tag = 'scoped memory for run.1']
    #allocation5 [shape = 's32[2]{0}', space=sflag, size = 0x8, scoped, tag = 'scoped memory for run.1']
    #allocation6 [shape = 'u8[6144]{0}', space=vmem, size = 0x1800, scoped, tag = 'input window, operand 1, single buffered']
    #allocation7 [shape = 's32[1]{0}', space=sflag, size = 0x4, scoped, tag = 'scoped memory for run.1']
    #allocation8 [shape = 'u8[6144]{0}', space=vmem, size = 0x1800, scoped, tag = 'input window, operand 2, single buffered']
    #allocation9 [shape = 'u8[24576]{0}', space=vmem, size = 0x6000, scoped, tag = 'output window, operand 0']
    %8 = vsyncpa [#allocation4], 0
    %s9 = scalar_lea.sflag [#allocation4], 1
    %10 = vsyncpa %s9, 0
    %11 = vsyncpa [#allocation7], 0
    %12 = vsyncpa [#allocation5], 0
    %s13 = scalar_lea.sflag [#allocation5], 1
    %14 = vsyncpa %s13, 0
    loop: start=0, step=1, limit=5
    $region2: #{run.1} parent=1 // loop_pre_header
      _
    $region3: #{run.1} parent=1 // loop_header
      %s16 = sphi 0, %s20
      %p17 = scmp.ge.s32.totalorder %s16, 5
      %s23 = sphi 0, %s35
      %s24 = sphi 0, %s31
      %s25 = sphi 0, %s23
      %s26 = sphi 0, %s24
      %s27 = sphi 0, %s25
      %s28 = sphi 0, %s26
      %s38 = sphi 0, %s40
      %s41 = sphi 0, %s38
      %s42 = sphi 0, %s41
      %s58 = sphi 0, %s42
      %s62 = sphi 0, %s62
      %s64 = sphi 0, %s62
      %s65 = sphi 0, %s64
      %s79 = sphi 0, %s65
      %s85 = sphi 0, %s87
      %s88 = sphi 0, %s85
      %s89 = sphi 0, %s88
      %s105 = sphi 0, %s89
      %s113 = sphi 0, %s115
      %s116 = sphi 0, %s113
      %s117 = sphi 0, %s116
      %s133 = sphi 0, %s117
    $region4: #{run.1} parent=1 // loop_header_branch
      %19 = sbr.rel (%p17) target = $region8
    $region5: #{run.1} parent=1 // loop_body
      %s21 = ssub.s32 %s16, 1
      %s22 = ssub.s32 %s16, 2
      %s29 = sadd.s32 1, %s24
      %p30 = scmp.ge.s32.totalorder %s29, 1
      %s31 = scalar_select %p30, 0, %s29
      %s32 = sadd.s32 1, %s23
      %s33 = scalar_select %p30, %s32, %s23
      %p34 = scmp.ge.s32.totalorder %s33, 3
      %s35 = scalar_select %p34, 0, %s33
      %s36 = ssub.s32 %s23, %s35
      %p37 = scmp.eq.s32.totalorder %s36, 0
      %s39 = sadd.s32 %s38, 1
      %s40 = scalar_select %p37, %s38, %s39
      %p43 = pneg %p37
      %p44 = scmp.eq.s32.totalorder %s16, 2
      %p45 = por %p43, %p44
      %p46 = scmp.ne.s32.totalorder %s38, %s41
      %p47 = scmp.eq.s32.totalorder %s16, 0
      %p48 = por %p46, %p47
      %p49 = scmp.ne.s32.totalorder %s38, %s41
      %p50 = scmp.eq.s32.totalorder %s21, 2
      %p51 = por %p49, %p50
      %p52 = scmp.ne.s32.totalorder %s41, %s42
      %p53 = scmp.eq.s32.totalorder %s21, 0
      %p54 = por %p52, %p53
      %p55 = scmp.ne.s32.totalorder %s41, %s42
      %p56 = scmp.eq.s32.totalorder %s22, 2
      %p57 = por %p55, %p56
      %p59 = scmp.ne.s32.totalorder %s42, %s58
      %p60 = scmp.eq.s32.totalorder %s22, 0
      %p61 = por %p59, %p60
      %s63 = sadd.s32 %s62, 1
      %p66 = scmp.eq.s32.totalorder %s16, 2
      %p67 = scmp.ne.s32.totalorder %s62, %s64
      %p68 = scmp.eq.s32.totalorder %s16, 0
      %p69 = por %p67, %p68
      %p70 = scmp.ne.s32.totalorder %s62, %s64
      %p71 = scmp.eq.s32.totalorder %s21, 2
      %p72 = por %p70, %p71
      %p73 = scmp.ne.s32.totalorder %s64, %s65
      %p74 = scmp.eq.s32.totalorder %s21, 0
      %p75 = por %p73, %p74
      %p76 = scmp.ne.s32.totalorder %s64, %s65
      %p77 = scmp.eq.s32.totalorder %s22, 2
      %p78 = por %p76, %p77
      %p80 = scmp.ne.s32.totalorder %s65, %s79
      %p81 = scmp.eq.s32.totalorder %s22, 0
      %p82 = por %p80, %p81
      %s83 = ssub.s32 %s24, %s31
      %p84 = scmp.eq.s32.totalorder %s83, 0
      %s86 = sadd.s32 %s85, 1
      %s87 = scalar_select %p84, %s85, %s86
      %p90 = pneg %p84
      %p91 = scmp.eq.s32.totalorder %s16, 2
      %p92 = por %p90, %p91
      %p93 = scmp.ne.s32.totalorder %s85, %s88
      %p94 = scmp.eq.s32.totalorder %s16, 0
      %p95 = por %p93, %p94
      %p96 = scmp.ne.s32.totalorder %s85, %s88
      %p97 = scmp.eq.s32.totalorder %s21, 2
      %p98 = por %p96, %p97
      %p99 = scmp.ne.s32.totalorder %s88, %s89
      %p100 = scmp.eq.s32.totalorder %s21, 0
      %p101 = por %p99, %p100
      %p102 = scmp.ne.s32.totalorder %s88, %s89
      %p103 = scmp.eq.s32.totalorder %s22, 2
      %p104 = por %p102, %p103
      %p106 = scmp.ne.s32.totalorder %s89, %s105
      %p107 = scmp.eq.s32.totalorder %s22, 0
      %p108 = por %p106, %p107
      %s109 = ssub.s32 %s23, %s35
      %s110 = ssub.s32 %s24, %s31
      %s111 = sor.u32 %s109, %s110
      %p112 = scmp.eq.s32.totalorder %s111, 0
      %s114 = sadd.s32 %s113, 1
      %s115 = scalar_select %p112, %s113, %s114
      %p118 = pneg %p112
      %p119 = scmp.eq.s32.totalorder %s16, 2
      %p120 = por %p118, %p119
      %p121 = scmp.ne.s32.totalorder %s113, %s116
      %p122 = scmp.eq.s32.totalorder %s16, 0
      %p123 = por %p121, %p122
      %p124 = scmp.ne.s32.totalorder %s113, %s116
      %p125 = scmp.eq.s32.totalorder %s21, 2
      %p126 = por %p124, %p125
      %p127 = scmp.ne.s32.totalorder %s116, %s117
      %p128 = scmp.eq.s32.totalorder %s21, 0
      %p129 = por %p127, %p128
      %p130 = scmp.ne.s32.totalorder %s116, %s117
      %p131 = scmp.eq.s32.totalorder %s22, 2
      %p132 = por %p130, %p131
      %p134 = scmp.ne.s32.totalorder %s117, %s133
      %p135 = scmp.eq.s32.totalorder %s22, 0
      %p136 = por %p134, %p135
      %p137 = scmp.le.s32.totalorder 1, %s16
      %p138 = scmp.lt.s32.totalorder %s16, 4
      %p139 = pnand %p137, %p138
      %p140 = pneg %p139
      // Predicated region
      $region9: #{run.1} parent=5 // pred_check
        _
      $region10: #{run.1} parent=5 // pred_check_branch
        %142 = sbr.rel (%p139) target = $region12
      $region11: #{run.1} parent=5 // pred_region
        %s143 = ssub.s32 %s16, 1
        // Predicated region
        $region13: #{run.1} parent=11 // pred_check
          %p144 = pneg %p75
        $region14: #{run.1} parent=11 // pred_check_branch
          %146 = sbr.rel (%p144) target = $region16
        $region15: #{run.1} parent=11 // pred_region
          %s148 = ssub.s32 192, 192
          %149 = vsyncadd [#allocation7], %s148
          %s150 = sshll.u32 [#allocation6], 4
          %s151 = int_to_ptr.vmem [resolvable:$true] %s150
          %156 = dma.hbm_to_vmem [thread:$0]  %s1, 192, %s151, [#allocation7], 64, 64, 4
        $region16: #{run.1} parent=11 // pred_fallthru
          _
        // Predicated region
        $region17: #{run.1} parent=11 // pred_check
          %p157 = pneg %p101
        $region18: #{run.1} parent=11 // pred_check_branch
          %159 = sbr.rel (%p157) target = $region20
        $region19: #{run.1} parent=11 // pred_region
          %s161 = ssub.s32 192, 192
          %162 = vsyncadd [#allocation7], %s161
          %s163 = smul.addr %s26, 64
          %s164 = scalar_lea.hbm %s2, %s163
          %s165 = sshll.u32 [#allocation8], 4
          %s166 = int_to_ptr.vmem [resolvable:$true] %s165
          %171 = dma.hbm_to_vmem [thread:$0]  %s164, 192, %s166, [#allocation7], 64, 64, 4
        $region20: #{run.1} parent=11 // pred_fallthru
          _
      $region12: #{run.1} parent=5 // pred_fallthru
        _
      %p172 = scmp.lt.s32.totalorder %s16, 3
      // Predicated region
      $region21: #{run.1} parent=5 // pred_check
        %p173 = pneg %p172
      $region22: #{run.1} parent=5 // pred_check_branch
        %175 = sbr.rel (%p173) target = $region24
      $region23: #{run.1} parent=5 // pred_region
        // Predicated region
        $region25: #{run.1} parent=23 // pred_check
          %p176 = pneg %p48
        $region26: #{run.1} parent=23 // pred_check_branch
          %178 = sbr.rel (%p176) target = $region28
        $region27: #{run.1} parent=23 // pred_region
          %s179 = sand.u32 %s38, 1
          %s180 = scalar_lea.sflag [#allocation4], %s179
          %s181 = sand.u32 %s38, 1
          %s182 = smul.addr %s181, 16
          %s183 = scalar_lea.vmem [#allocation3], %s182
          %s185 = ssub.s32 256, 256
          %186 = vsyncadd %s180, %s185
          %s187 = smul.addr %s23, 2
          %s188 = smul.addr %s187, 128
          %s189 = scalar_lea.hbm %s0, %s188
          %s190 = sshll.u32 %s183, 4
          %s191 = int_to_ptr.vmem [resolvable:$true] %s190
          %196 = dma.hbm_to_vmem [thread:$0]  %s189, 256, %s191, %s180, 128, 128, 8
        $region28: #{run.1} parent=23 // pred_fallthru
          _
      $region24: #{run.1} parent=5 // pred_fallthru
        _
      %p197 = scmp.le.s32.totalorder 1, %s16
      %p198 = scmp.lt.s32.totalorder %s16, 4
      %p199 = pnand %p197, %p198
      %p200 = pneg %p199
      // Predicated region
      $region29: #{run.1} parent=5 // pred_check
        _
      $region30: #{run.1} parent=5 // pred_check_branch
        %202 = sbr.rel (%p199) target = $region32
      $region31: #{run.1} parent=5 // pred_region
        %s203 = ssub.s32 %s16, 1
        %s204 = sand.u32 %s41, 1
        %s205 = scalar_lea.sflag [#allocation4], %s204
        %s206 = sand.u32 %s41, 1
        %s207 = smul.addr %s206, 16
        %s208 = scalar_lea.vmem [#allocation3], %s207
        // Predicated region
        $region33: #{run.1} parent=31 // pred_check
          %p209 = pneg %p54
        $region34: #{run.1} parent=31 // pred_check_branch
          %211 = sbr.rel (%p209) target = $region36
        $region35: #{run.1} parent=31 // pred_region
          %212 = dma.done %s205, 256
        $region36: #{run.1} parent=31 // pred_fallthru
          _
        // Predicated region
        $region37: #{run.1} parent=31 // pred_check
          %p213 = pneg %p75
        $region38: #{run.1} parent=31 // pred_check_branch
          %215 = sbr.rel (%p213) target = $region40
        $region39: #{run.1} parent=31 // pred_region
          %216 = dma.done [#allocation7], 192
        $region40: #{run.1} parent=31 // pred_fallthru
          _
        // Predicated region
        $region41: #{run.1} parent=31 // pred_check
          %p217 = pneg %p101
        $region42: #{run.1} parent=31 // pred_check_branch
          %219 = sbr.rel (%p217) target = $region44
        $region43: #{run.1} parent=31 // pred_region
          %220 = dma.done [#allocation7], 192
        $region44: #{run.1} parent=31 // pred_fallthru
          _
        %s221 = sand.u32 %s41, 1
        %s222 = scalar_lea.sflag [#allocation4], %s221
        %s223 = sand.u32 %s41, 1
        %s224 = smul.addr %s223, 16
        %s225 = scalar_lea.vmem [#allocation3], %s224
        %p226 = pneg %p54
        %p227 = pneg %p51
        %p228 = pneg %p75
        %p229 = pneg %p72
        %p230 = pneg %p101
        %p231 = pneg %p98
        %p232 = pneg %p129
        %p233 = pneg %p126
        %s234 = sand.u32 %s116, 1
        %s235 = scalar_lea.sflag [#allocation5], %s234
        %s236 = sand.u32 %s116, 1
        %s237 = smul.addr %s236, 24
        %s238 = scalar_lea.vmem [#allocation9], %s237
        %p240 = scmp.eq.s32.totalorder %s26, 0
        // Predicated region
        $region45: #{run.1} parent=31 // pred_check
          %p241 = pneg %p240
        $region46: #{run.1} parent=31 // pred_check_branch
          %243 = sbr.rel (%p241) target = $region48
        $region47: #{run.1} parent=31 // pred_region
          %v244 = vld [vmem:[#allocation6] sm:$0xf]
          %v245 = vld [vmem:[#allocation6 + $0x4] sm:$0xf]
          %v246 = vld [vmem:[#allocation6 + $0x8] sm:$0xf]
          %v247 = vld [vmem:[%s208] sm:$0xff]
          %v248 = vld [vmem:[%s208 + $0x8] sm:$0xff]
          %v249 = vpack.c.bf16 %v248, %v247
          %v253 = vunpack.c.l.b16 %v244
          %v254 = vunpack.c.l.b16 %v245
          %v255 = vunpack.c.l.b16 %v246
          %v256 = vpack.c.b16 %v254, %v253
          %v257 = vpack.c.b16 %v255, %v255
          %vm258 = vcmask 130048
          %v260 = vsel %vm258, %v256, 0
          %v263 = vsel %vm258, %v257, 0
          %265 = vmatprep.subr.bf16.mxu0 0
          %266 = vmatpush1.bf16.msra.mxu0 %v249
          %267 = vmatprep.subr.bf16.mxu0 0
          %268 = vmatpush1.bf16.msra.mxu0 0
          %269 = vmatprep.subr.bf16.mxu0 0
          %270 = vmatpush1.bf16.msra.mxu0 0
          %271 = vmatprep.subr.bf16.mxu0 0
          %272 = vmatpush1.bf16.msra.mxu0 0
          %273 = vmatprep.subr.bf16.mxu0 0
          %274 = vmatpush1.bf16.msra.mxu0 0
          %275 = vmatprep.subr.bf16.mxu0 0
          %276 = vmatpush1.bf16.msra.mxu0 0
          %277 = vmatprep.subr.bf16.mxu0 0
          %278 = vmatpush1.bf16.msra.mxu0 0
          %279 = vmatprep.subr.bf16.mxu0 0
          %280 = vmatpush1.bf16.msra.mxu0 0
          %281 = vmatprep.subr.bf16.mxu0 0
          %282 = vmatpush1.bf16.msra.mxu0 0
          %283 = vmatprep.subr.bf16.mxu0 0
          %284 = vmatpush1.bf16.msra.mxu0 0
          %285 = vmatprep.subr.bf16.mxu0 0
          %286 = vmatpush1.bf16.msra.mxu0 0
          %287 = vmatprep.subr.bf16.mxu0 0
          %288 = vmatpush1.bf16.msra.mxu0 0
          %289 = vmatprep.subr.bf16.mxu0 0
          %290 = vmatpush1.bf16.msra.mxu0 0
          %291 = vmatprep.subr.bf16.mxu0 0
          %292 = vmatpush1.bf16.msra.mxu0 0
          %293 = vmatprep.subr.bf16.mxu0 0
          %294 = vmatpush1.bf16.msra.mxu0 0
          %295 = vmatprep.subr.bf16.mxu0 0
          %296 = vmatpush1.bf16.msra.mxu0 0
          %297 = vmatprep.mubr.bf16.mxu0 0
          %298 = vmatmul.mubr.bf16.gmra.mrb[0].mxu0 %v260
          %v299 = vpop.f32.mrb[0].mxu0
          %v300 = vadd.f32 0.0, %v299
          %v301 = vpop.f32.mrb[0].mxu0
          %v302 = vpop.f32.mrb[0].mxu0
          %v303 = vadd.f32 0.0, %v302
          %v304 = vpop.f32.mrb[0].mxu0
          %305 = vmatprep.mubr.bf16.mxu0 0
          %306 = vmatmul.mubr.bf16.gmra.mrb[0].mxu0 %v263
          %v307 = vpop.f32.mrb[0].mxu0
          %v308 = vadd.f32 0.0, %v307
          %v309 = vpop.f32.mrb[0].mxu0
          %v310 = vpop.f32.mrb[0].mxu0
          %v311 = vpop.f32.mrb[0].mxu0
          %312 = vdwg.mxu0
          %v313 = vpack.c.bf16 %v303, %v300
          %v314 = vpack.c.bf16 %v308, %v308
          %v317 = vunpack.c.l.b16 %v313
          %v318 = vunpack.c.h.b16 %v313
          %v319 = vunpack.c.l.b16 %v314
          %v320 = vpack.c.b16 %v317, %v317
          %v321 = vpack.c.b16 %v318, %v318
          %v322 = vpack.c.b16 %v319, %v319
          %vm326 = vcmask 158720
          %327 = vst.msk [vmem:[#allocation2] sm:$0xf] %vm326, %v320
          %328 = vst.msk [vmem:[#allocation2 + $0x4] sm:$0xf] %vm326, %v321
          %329 = vst.msk [vmem:[#allocation2 + $0x8] sm:$0xf] %vm326, %v322
        $region48: #{run.1} parent=31 // pred_fallthru
          _
        %v330 = vld [vmem:[#allocation2] sm:$0xf]
        %v331 = vld [vmem:[#allocation2 + $0x4] sm:$0xf]
        %v332 = vld [vmem:[#allocation2 + $0x8] sm:$0xf]
        %v333 = vld [vmem:[#allocation8] sm:$0xf]
        %v334 = vld [vmem:[#allocation8 + $0x4] sm:$0xf]
        %v335 = vld [vmem:[#allocation8 + $0x8] sm:$0x3]
        %v339 = vunpack.c.l.b16 %v330
        %v340 = vunpack.c.l.b16 %v331
        %v341 = vunpack.c.l.b16 %v332
        %v342 = vpack.c.b16 %v340, %v339
        %v343 = vpack.c.b16 %v341, %v341
        %v347 = vunpack.c.l.b16 %v333
        %v348 = vunpack.c.l.b16 %v334
        %v349 = vunpack.c.l.b16 %v335
        %v350 = vpack.c.b16 %v348, %v347
        %v351 = vpack.c.b16 %v349, %v349
        %vm353 = vcmask 162816
        %v355 = vsel %vm353, %v342, 0
        %v358 = vsel %vm353, %v343, 0
        %vm360 = vcmask 1041408
        %v362 = vsel %vm360, %v351, 0
        %364 = vmatprep.subr.bf16.mxu0 0
        %365 = vmatpush1.bf16.msra.mxu0 %v350
        %366 = vmatprep.subr.bf16.mxu0 0
        %367 = vmatpush1.bf16.msra.mxu0 %v362
        %368 = vmatprep.subr.bf16.mxu0 0
        %369 = vmatpush1.bf16.msra.mxu0 0
        %370 = vmatprep.subr.bf16.mxu0 0
        %371 = vmatpush1.bf16.msra.mxu0 0
        %372 = vmatprep.subr.bf16.mxu0 0
        %373 = vmatpush1.bf16.msra.mxu0 0
        %374 = vmatprep.subr.bf16.mxu0 0
        %375 = vmatpush1.bf16.msra.mxu0 0
        %376 = vmatprep.subr.bf16.mxu0 0
        %377 = vmatpush1.bf16.msra.mxu0 0
        %378 = vmatprep.subr.bf16.mxu0 0
        %379 = vmatpush1.bf16.msra.mxu0 0
        %380 = vmatprep.subr.bf16.mxu0 0
        %381 = vmatpush1.bf16.msra.mxu0 0
        %382 = vmatprep.subr.bf16.mxu0 0
        %383 = vmatpush1.bf16.msra.mxu0 0
        %384 = vmatprep.subr.bf16.mxu0 0
        %385 = vmatpush1.bf16.msra.mxu0 0
        %386 = vmatprep.subr.bf16.mxu0 0
        %387 = vmatpush1.bf16.msra.mxu0 0
        %388 = vmatprep.subr.bf16.mxu0 0
        %389 = vmatpush1.bf16.msra.mxu0 0
        %390 = vmatprep.subr.bf16.mxu0 0
        %391 = vmatpush1.bf16.msra.mxu0 0
        %392 = vmatprep.subr.bf16.mxu0 0
        %393 = vmatpush1.bf16.msra.mxu0 0
        %394 = vmatprep.subr.bf16.mxu0 0
        %395 = vmatpush1.bf16.msra.mxu0 0
        %396 = vmatprep.mubr.bf16.mxu0 0
        %397 = vmatmul.mubr.bf16.gmra.mrb[0].mxu0 %v355
        %v398 = vpop.f32.mrb[0].mxu0
        %v399 = vadd.f32 0.0, %v398
        %v400 = vpop.f32.mrb[0].mxu0
        %v401 = vpop.f32.mrb[0].mxu0
        %v402 = vadd.f32 0.0, %v401
        %v403 = vpop.f32.mrb[0].mxu0
        %404 = vmatprep.mubr.bf16.mxu0 0
        %405 = vmatmul.mubr.bf16.gmra.mrb[0].mxu0 %v358
        %v406 = vpop.f32.mrb[0].mxu0
        %v407 = vadd.f32 0.0, %v406
        %v408 = vpop.f32.mrb[0].mxu0
        %v409 = vpop.f32.mrb[0].mxu0
        %v410 = vpop.f32.mrb[0].mxu0
        %411 = vdwg.mxu0
        %412 = vst [vmem:[%s238] sm:$0xff] %v399
        %413 = vst [vmem:[%s238 + $0x8] sm:$0xff] %v402
        %414 = vst [vmem:[%s238 + $0x10] sm:$0xff] %v407
        %s415 = sand.u32 %s116, 1
        %s416 = scalar_lea.sflag [#allocation5], %s415
        %s417 = sand.u32 %s116, 1
        %s418 = smul.addr %s417, 24
        %s419 = scalar_lea.vmem [#allocation9], %s418
        // Predicated region
        $region49: #{run.1} parent=31 // pred_check
          %p420 = pneg %p126
        $region50: #{run.1} parent=31 // pred_check_branch
          %422 = sbr.rel (%p420) target = $region52
        $region51: #{run.1} parent=31 // pred_region
          %s424 = ssub.s32 384, 384
          %425 = vsyncadd %s416, %s424
          %s426 = smul.addr %s25, 3
          %s427 = sadd.s32 %s26, %s426
          %s428 = smul.addr %s427, 128
          %s429 = scalar_lea.hbm %s3, %s428
          %s430 = sshll.u32 %s419, 4
          %s431 = int_to_ptr.vmem [resolvable:$true] %s430
          %436 = dma.vmem_to_hbm [thread:$0]  %s431, 384, %s429, %s416, 128, 128, 8
        $region52: #{run.1} parent=31 // pred_fallthru
          _
      $region32: #{run.1} parent=5 // pred_fallthru
        _
      %p437 = scmp.le.s32.totalorder 2, %s16
      // Predicated region
      $region53: #{run.1} parent=5 // pred_check
        %p438 = pneg %p437
      $region54: #{run.1} parent=5 // pred_check_branch
        %440 = sbr.rel (%p438) target = $region56
      $region55: #{run.1} parent=5 // pred_region
        %s441 = ssub.s32 %s16, 2
        // Predicated region
        $region57: #{run.1} parent=55 // pred_check
          %p442 = pneg %p132
        $region58: #{run.1} parent=55 // pred_check_branch
          %444 = sbr.rel (%p442) target = $region60
        $region59: #{run.1} parent=55 // pred_region
          %s445 = sand.u32 %s117, 1
          %s446 = scalar_lea.sflag [#allocation5], %s445
          %s447 = sand.u32 %s117, 1
          %s448 = smul.addr %s447, 24
          %s449 = scalar_lea.vmem [#allocation9], %s448
          %450 = dma.done %s446, 384
        $region60: #{run.1} parent=55 // pred_fallthru
          _
      $region56: #{run.1} parent=5 // pred_fallthru
        _
    $region6: #{run.1} parent=1 // loop_footer
      %s20 = sadd.s32 1, %s16
    $region7: #{run.1} parent=1 // loop_footer_branch
      %15 = sbr.rel target = $region3
    $region8: #{run.1} parent=1 // loop_exit
      _
    %451 = vsyncpa [#allocation4], 1
    %s452 = scalar_lea.sflag [#allocation4], 1
    %453 = vsyncpa %s452, 1
    %454 = vsyncpa [#allocation7], 1
    %455 = vsyncpa [#allocation5], 1
    %s456 = scalar_lea.sflag [#allocation5], 1
    %457 = vsyncpa %s456, 1

</llo_original>
